<compile_context>
chip_gen: v7x
topology: tpu7x:2x2x1
jax: 0.10.0
libtpu: 0.0.40
codegen_flags: <defaults>
</compile_context>

<pallas_src>
import functools
import math

import jax
import jax.numpy as jnp
from jax import lax
from jax.experimental import pallas as pl
from jax.experimental.pallas import tpu as pltpu


# ---------------------------------------------------------------------------
# Small helpers
# ---------------------------------------------------------------------------
def _round_up(x, m):
    return ((x + m - 1) // m) * m


def _pick_tile(n, candidates):
    """Largest candidate that divides n exactly, else the full dim."""
    for c in candidates:
        if n % c == 0:
            return c
    return n


@functools.lru_cache(maxsize=1)
def _vmem_capacity_bytes():
    try:
        info = pltpu.get_tpu_info()
        cap = int(getattr(info, "vmem_capacity_bytes", 0) or 0)
        if cap > 0:
            return cap
    except Exception:
        pass
    return 64 * 2**20  # conservative fallback (v7x physical VMEM)


def _vmem_limit_bytes():
    # ~0.75x physical VMEM: 96 MiB on v5e/v6e (128 MiB), 48 MiB on v7x (64 MiB).
    # Leaves headroom for Mosaic-internal scratch / semaphores.
    return int(_vmem_capacity_bytes() * 3 // 4)


# ---------------------------------------------------------------------------
# Pallas kernels
# ---------------------------------------------------------------------------
def _score_kernel(z_ref, s_ref, m_ref, o_ref):
    # Lane-dense scores over the flattened (T*N) node axis:
    #   scores^T = scorer_scaled (1,F) . Z_flat^T + mask^T  -> (1, TN)
    # scorer_scaled already contains the 1/||scorer|| factor (hoisted).
    o_ref[...] = (
        lax.dot_general(
            s_ref[...], z_ref[...],
            (((1,), (1,)), ((), ())),
            preferred_element_type=jnp.float32,
        )
        + m_ref[...]
    )


def _gru_seq_kernel(z_ref, q0_ref, wcat_ref, ucat_ref, uh_ref, bcat_ref,
                    out_ref, q_scr):
    # Whole T-step mat_GRU recurrence, one grid step per timestep.
    # Everything is transposed:  P = Q^T (F_out, F_in), X = z_topk^T (F_out, F_in).
    #   gate^T = X @ W^T + P @ U^T + b^T   (F_in on the lane axis)
    # Fused weights: wcat = [Wu^T | Wr^T | Wh^T] (F_in, 3F), ucat = [Uu^T | Ur^T].
    F = uh_ref.shape[0]
    wdt = wcat_ref.dtype  # gate residents may be bf16 on VMEM-tight parts

    @pl.when(pl.program_id(0) == 0)
    def _():
        q_scr[...] = q0_ref[...]

    x = z_ref[...]
    q = q_scr[...]

    xwb = (jnp.dot(x.astype(wdt), wcat_ref[...],
                   preferred_element_type=jnp.float32) + bcat_ref[...])
    qu = jnp.dot(q.astype(wdt), ucat_ref[...],
                 preferred_element_type=jnp.float32)

    update = jax.nn.sigmoid(xwb[:, :F] + qu[:, :F])
    reset = jax.nn.sigmoid(xwb[:, F:2 * F] + qu[:, F:2 * F])
    hu = jnp.dot((reset * q).astype(wdt), uh_ref[...],
                 preferred_element_type=jnp.float32)
    h_cap = jnp.tanh(xwb[:, 2 * F:] + hu)

    q_new = (1.0 - update) * q + update * h_cap
    q_scr[...] = q_new
    out_ref[...] = q_new


def _zw_kernel(z_ref, p_ref, o_ref):
    # ZW_t = Z_t @ P_t^T  (P is the evolved GCN weight in transposed layout
    # (F_out, F_in); trans_b contraction avoids a separate transpose pass).
    o_ref[...] = lax.dot_general(
        z_ref[...], p_ref[...],
        (((1,), (1,)), ((), ())),
        preferred_element_type=jnp.float32,
    ).astype(o_ref.dtype)


def _gcn_kernel(a_ref, zw_ref, o_ref, acc_ref, *, tk):
    # out = relu(A @ ZW), K-tiled with an f32 accumulator.  The full ZW_t block
    # stays VMEM-resident for the timestep; slice the current K chunk in-kernel.
    kk = pl.program_id(2)

    @pl.when(kk == 0)
    def _():
        acc_ref[...] = jnp.zeros_like(acc_ref)

    k_start = pl.multiple_of(kk * tk, tk)
    acc_ref[...] += jnp.dot(a_ref[...], zw_ref[pl.ds(k_start, tk), :],
                            preferred_element_type=jnp.float32)

    @pl.when(kk == pl.num_programs(2) - 1)
    def _():
        o_ref[...] = jnp.maximum(acc_ref[...], 0.0).astype(o_ref.dtype)


# ---------------------------------------------------------------------------
# Pallas call wrappers
# ---------------------------------------------------------------------------
def topk_scores_all(Z_stack, scorer_T, mask_flat):
    """Scores for every timestep in one flat, lane-dense pass. Returns (T, N) f32."""
    T, N, F_in = Z_stack.shape
    Z_flat = Z_stack.reshape(T * N, F_in)
    scorer = scorer_T.astype(Z_stack.dtype)
    TN = _pick_tile(T * N, (4096, 2048, 1024, 512, 256, 128))
    out = pl.pallas_call(
        _score_kernel,
        out_shape=jax.ShapeDtypeStruct((1, T * N), jnp.float32),
        grid_spec=pltpu.PrefetchScalarGridSpec(
            num_scalar_prefetch=0,
            grid=(T * N // TN,),
            in_specs=[
                pl.BlockSpec((TN, F_in), lambda i: (i, 0)),
                pl.BlockSpec((1, F_in), lambda i: (0, 0)),      # resident
                pl.BlockSpec((1, TN), lambda i: (0, i)),
            ],
            out_specs=pl.BlockSpec((1, TN), lambda i: (0, i)),
        ),
        compiler_params=pltpu.CompilerParams(
            dimension_semantics=("parallel",)),
    )(Z_flat, scorer, mask_flat)
    return out.reshape(T, N)


def gru_evolve_weights(packed, z_topk_T):
    """Run the whole T-step mat_GRU recurrence in one pallas_call.

    z_topk_T: (T, F_out, F_in). Returns stacked Q^T of shape (T, F_out, F_in) f32.
    """
    T, k, F_in = z_topk_T.shape
    const2 = lambda t: (0, 0)
    return pl.pallas_call(
        _gru_seq_kernel,
        out_shape=jax.ShapeDtypeStruct((T, k, F_in), jnp.float32),
        grid_spec=pltpu.PrefetchScalarGridSpec(
            num_scalar_prefetch=0,
            grid=(T,),
            in_specs=[
                pl.BlockSpec((None, k, F_in), lambda t: (t, 0, 0)),
                pl.BlockSpec((k, F_in), const2),          # Q0^T (resident)
                pl.BlockSpec((F_in, 3 * F_in), const2),   # [Wu|Wr|Wh]^T (resident)
                pl.BlockSpec((F_in, 2 * F_in), const2),   # [Uu|Ur]^T   (resident)
                pl.BlockSpec((F_in, F_in), const2),       # Uh^T        (resident)
                pl.BlockSpec((k, 3 * F_in), const2),      # [bu|br|bh]^T (resident)
            ],
            out_specs=pl.BlockSpec((None, k, F_in), lambda t: (t, 0, 0)),
            scratch_shapes=[pltpu.VMEM((k, F_in), jnp.float32)],
        ),
        compiler_params=pltpu.CompilerParams(
            dimension_semantics=("arbitrary",),   # sequential recurrence over t
            vmem_limit_bytes=_vmem_limit_bytes()),
    )(z_topk_T, packed["q0_T"], packed["wcat_T"], packed["ucat_T"],
      packed["uh_T"], packed["bcat_T"])


def zw_matmul(Z_cd, P_cd, compute_dtype):
    """ZW_t = Z_t @ P_t^T for all t (P is (T, F_out, F_in)). Returns (T, N, F_out)."""
    T, N, F_in = Z_cd.shape
    F_out = P_cd.shape[1]
    TMZ = _pick_tile(N, (1024, 512, 256, 128))
    return pl.pallas_call(
        _zw_kernel,
        out_shape=jax.ShapeDtypeStruct((T, N, F_out), compute_dtype),
        grid_spec=pltpu.PrefetchScalarGridSpec(
            num_scalar_prefetch=0,
            grid=(T, N // TMZ),
            in_specs=[
                pl.BlockSpec((None, TMZ, F_in), lambda t, i: (t, i, 0)),
                pl.BlockSpec((None, F_out, F_in), lambda t, i: (t, 0, 0)),
            ],
            out_specs=pl.BlockSpec((None, TMZ, F_out), lambda t, i: (t, i, 0)),
        ),
        compiler_params=pltpu.CompilerParams(
            dimension_semantics=("parallel", "parallel"),
            vmem_limit_bytes=_vmem_limit_bytes()),
    )(Z_cd, P_cd)


def _gcn_tiles(N, F_out, item_a, item_zw, item_out, budget):
    """Largest (TM, TK) A tile whose double-buffered footprint + resident ZW fits."""
    tm_cands = [c for c in (512, 256, 128, 64, 32, 16, 8) if N % c == 0] or [N]
    tk_cands = [c for c in (2048, 1024, 512, 256, 128) if N % c == 0] or [N]
    resident_zw = 2 * N * F_out * item_zw             # double-buffered ZW_t
    for tm in tm_cands:
        for tk in tk_cands:
            need = (2 * tm * tk * item_a               # A tiles, double-buffered
                    + resident_zw
                    + 2 * tm * F_out * item_out        # output tiles
                    + tm * F_out * 4)                  # f32 accumulator scratch
            if need <= budget:
                return tm, tk
    return tm_cands[-1], tk_cands[-1]


def gcn_spmm_relu(A_cd, ZW, out_dtype):
    """relu(Ahat_t @ ZW_t) for all t, ZW_t VMEM-resident per timestep."""
    T, N, _ = A_cd.shape
    F_out = ZW.shape[-1]
    item_a = jnp.dtype(A_cd.dtype).itemsize
    item_zw = jnp.dtype(ZW.dtype).itemsize
    item_out = jnp.dtype(out_dtype).itemsize
    budget = _vmem_capacity_bytes() // 2               # headroom under vmem_limit
    TM, TK = _gcn_tiles(N, F_out, item_a, item_zw, item_out, budget)
    # Keep >= 2 units of grid-parallel work so v7x's two TensorCores stay busy.
    while T * (N // TM) < 2 and TM > 128 and N % (TM // 2) == 0:
        TM //= 2

    flops = 2 * T * N * N * F_out
    bytes_accessed = (T * N * N * item_a               # A stream
                      + T * N * F_out * item_zw        # ZW read once per t
                      + T * N * F_out * item_out)      # output writeback
    kernel = functools.partial(_gcn_kernel, tk=TK)
    return pl.pallas_call(
        kernel,
        out_shape=jax.ShapeDtypeStruct((T, N, F_out), out_dtype),
        grid_spec=pltpu.PrefetchScalarGridSpec(
            num_scalar_prefetch=0,
            grid=(T, N // TM, N // TK),
            in_specs=[
                pl.BlockSpec((None, TM, TK), lambda t, i, kk: (t, i, kk)),
                # Full ZW_t stays VMEM-resident across row/K tiles (DMA once per t).
                pl.BlockSpec((None, N, F_out), lambda t, i, kk: (t, 0, 0)),
            ],
            out_specs=pl.BlockSpec((None, TM, F_out), lambda t, i, kk: (t, i, 0)),
            scratch_shapes=[pltpu.VMEM((TM, F_out), jnp.float32)],
        ),
        compiler_params=pltpu.CompilerParams(
            dimension_semantics=("parallel", "parallel", "arbitrary"),
            vmem_limit_bytes=_vmem_limit_bytes()),
        cost_estimate=pl.CostEstimate(
            flops=flops, transcendentals=0, bytes_accessed=bytes_accessed),
    )(A_cd, ZW)


# ---------------------------------------------------------------------------
# Forward pass (glue in plain JAX)
# ---------------------------------------------------------------------------
def _pack_grcu_params(p, compute_dtype):
    """Transpose / concatenate gate weights once per forward call."""
    scorer = p["scorer"]                              # (F_in, 1)
    F_in = scorer.shape[0]
    norm = jnp.sqrt(jnp.sum(scorer * scorer))
    # Guard: the reference NaNs on an exactly-zero scorer; clamp the denominator.
    inv_norm = 1.0 / jnp.maximum(norm, 1e-12)
    # Resident GRU gate weights are 24*F_in^2 bytes in f32; drop to compute_dtype
    # when that would stress VMEM (v7x). Accumulation stays f32 either way.
    gate_dtype = (jnp.float32
                  if 24 * F_in * F_in <= _vmem_capacity_bytes() // 4
                  else compute_dtype)
    wcat = jnp.concatenate(
        [p["update"]["W"].T, p["reset"]["W"].T, p["htilda"]["W"].T], axis=1)
    ucat = jnp.concatenate([p["update"]["U"].T, p["reset"]["U"].T], axis=1)
    return {
        "scorer_T": (scorer * inv_norm).reshape(1, -1),                    # (1, F_in)
        "q0_T": p["gcn_init"].T,                                           # (F_out, F_in)
        "wcat_T": wcat.astype(gate_dtype),                                 # (F_in, 3F_in)
        "ucat_T": ucat.astype(gate_dtype),                                 # (F_in, 2F_in)
        "uh_T": p["htilda"]["U"].T.astype(gate_dtype),                     # (F_in, F_in)
        "bcat_T": jnp.concatenate(
            [p["update"]["b"].T, p["reset"]["b"].T, p["htilda"]["b"].T], axis=1),
    }


def _select_topk(Z_stack, scores, k):
    """TopK rows per timestep (transposed layout): returns (T, k, F_in) f32."""
    vals, idx = lax.top_k(scores, k)                  # (T, k), sorted descending
    # pad_with_last_val: replace -inf-scored selections by the last valid index.
    finite = vals > -jnp.inf
    count = jnp.sum(finite, axis=1)
    last = jnp.maximum(count - 1, 0)
    last_idx = jnp.take_along_axis(idx, last[:, None], axis=1)
    idx = jnp.where(finite, idx, last_idx)
    sel_scores = jnp.take_along_axis(scores, idx, axis=1)                  # (T, k)
    T, N, F_in = Z_stack.shape
    gather_idx = jnp.broadcast_to(idx[:, :, None], (T, k, F_in))
    sel_rows = jnp.take_along_axis(Z_stack, gather_idx, axis=1)            # (T, k, F_in)
    # No trailing .T: the transposed GRU consumes (k, F_in) directly.
    return sel_rows * jnp.tanh(sel_scores)[:, :, None]


def grcu_forward(params, A_cd, Z_stack, mask_flat, compute_dtype, out_dtype):
    """One GRCU layer over the whole sequence. Returns (T, N, F_out)."""
    packed = _pack_grcu_params(params, compute_dtype)
    k = params["gcn_init"].shape[1]                   # cols == out_feats
    scores = topk_scores_all(Z_stack, packed["scorer_T"], mask_flat)       # (T, N)
    # TODO(synk): torch.topk vs lax.top_k tie-break order may differ on exact ties.
    z_topk_T = _select_topk(Z_stack, scores, k)                            # (T, k, F_in)
    P_seq = gru_evolve_weights(packed, z_topk_T)                           # (T, F_out, F_in)
    ZW = zw_matmul(Z_stack.astype(compute_dtype),
                   P_seq.astype(compute_dtype), compute_dtype)             # (T, N, F_out)
    return gcn_spmm_relu(A_cd, ZW, out_dtype)                              # (T, N, F_out)


def egcn_forward(params_list, feats, A_list, Nodes_list, mask_list,
                 skipfeats=False, compute_dtype=jnp.bfloat16):
    """EGCN forward. Matmul operands are bf16 (f32 accumulation) by default;
    pass compute_dtype=jnp.float32 for bit-faithful f32 matmuls."""
    del feats  # shapes are derived from the parameters
    T = len(A_list)
    node_feats = jnp.asarray(Nodes_list[-1], jnp.float32)
    N = jnp.asarray(A_list[0]).shape[0]

    # Pad the node axis to a multiple of 256: zero rows/cols in Ahat/Z, -inf mask
    # so padded nodes are never selected by TopK.  Padded output rows stay zero.
    N_pad = _round_up(N, 256)
    pad = N_pad - N

    A_cd = jnp.stack([jnp.asarray(a, jnp.float32) for a in A_list])
    A_cd = jnp.pad(A_cd, ((0, 0), (0, pad), (0, pad))).astype(compute_dtype)

    Z_stack = jnp.stack([jnp.asarray(z, jnp.float32) for z in Nodes_list])
    Z_stack = jnp.pad(Z_stack, ((0, 0), (0, pad), (0, 0)))

    mask = jnp.stack([jnp.asarray(m, jnp.float32).reshape(-1) for m in mask_list])
    mask = jnp.pad(mask, ((0, 0), (0, pad)), constant_values=-jnp.inf)
    mask_flat = mask.reshape(1, T * N_pad)                                 # (1, T*N_pad)

    # TODO(synk): also pad F_in / F_out (=k) to multiples of 128 (zero-padded
    # weights) for lane-dense stores and aligned GRU gate slices; note F_out
    # padding interacts with the TopK k == out_feats invariant.
    for li, p in enumerate(params_list):
        out_dtype = jnp.float32 if li == len(params_list) - 1 else compute_dtype
        Z_stack = grcu_forward(p, A_cd, Z_stack, mask_flat, compute_dtype, out_dtype)

    out = Z_stack[-1][:N]
    if skipfeats:
        out = jnp.concatenate([out, node_feats], axis=1)
    return out


# ---------------------------------------------------------------------------
# Deterministic parameter init (mirrors the torch __init__ shapes / stdv)
# ---------------------------------------------------------------------------
def _uniform(key, shape, stdv):
    return jax.random.uniform(key, shape, jnp.float32, -stdv, stdv)


def init_grcu_params(key, in_feats, out_feats):
    rows, cols = in_feats, out_feats
    ks = jax.random.split(key, 8)
    stdv_rows = 1.0 / math.sqrt(rows)
    params = {
        "gcn_init": _uniform(ks[0], (in_feats, out_feats), 1.0 / math.sqrt(out_feats)),
        "scorer": _uniform(ks[1], (rows, 1), 1.0 / math.sqrt(rows)),
    }
    for name, ka, kb in (
        ("update", ks[2], ks[3]),
        ("reset", ks[4], ks[5]),
        ("htilda", ks[6], ks[7]),
    ):
        params[name] = {
            "W": _uniform(ka, (rows, rows), stdv_rows),
            "U": _uniform(kb, (rows, rows), stdv_rows),
            "b": jnp.zeros((rows, cols), jnp.float32),
        }
    return params


# ---------------------------------------------------------------------------
if __name__ == "__main__":
    key = jax.random.PRNGKey(0)
    N, T = 32, 3
    # feats = [feats_per_node, layer_1_feats, layer_2_feats]; EGCN.__init__ builds
    # GRCU layers for i in range(1, len(feats)-1) -> a single layer feats[0]->feats[1].
    feats = [32, 16, 8]

    k_params, k_data = jax.random.split(key)
    params_list = [init_grcu_params(k_params, feats[0], feats[1])]

    dk = jax.random.split(k_data, 2 * T)
    A_list = []
    for t in range(T):
        A = jax.random.uniform(dk[t], (N, N), jnp.float32)
        A_list.append(A / jnp.sum(A, axis=1, keepdims=True))  # row-normalized Ahat
    Nodes_list = [
        jax.random.normal(dk[T + t], (N, feats[0]), jnp.float32) for t in range(T)
    ]
    mask_list = [jnp.zeros((N, 1), jnp.float32) for _ in range(T)]

    out = egcn_forward(params_list, feats, A_list, Nodes_list, mask_list)
    out = jax.block_until_ready(out)
    assert out.shape == (N, feats[1]) and out.dtype == jnp.float32
    print("KERNEL_OK")
</pallas_src>

<mosaic_0001>
module attributes {stable_mosaic.version = 11 : i64} {
  func.func @_score_kernel(%arg0: i32, %arg1: memref<256x32xf32, #tpu.memory_space<vmem>>, %arg2: memref<1x32xf32, #tpu.memory_space<vmem>>, %arg3: memref<1x256xf32, #tpu.memory_space<vmem>>, %arg4: memref<1x256xf32, #tpu.memory_space<vmem>>) attributes {dimension_semantics = [#tpu.dimension_semantics<parallel>], iteration_bounds = array<i64: 3>, scalar_prefetch = 0 : i64, scratch_operands = 0 : i64, tpu.core_type = #tpu.core_type<tc>, window_params = [{transform_indices = @transform_0, window_bounds = array<i64: 256, 32>}, {pipeline_mode = #tpu.pipeline_mode<synchronous>, transform_indices = @transform_1, window_bounds = array<i64: 1, 32>}, {transform_indices = @transform_2, window_bounds = array<i64: 1, 256>}, {transform_indices = @transform_3, window_bounds = array<i64: 1, 256>}]} {
    %c0 = arith.constant 0 : index
    %c0_0 = arith.constant 0 : index
    %0 = vector.load %arg2[%c0, %c0_0] : memref<1x32xf32, #tpu.memory_space<vmem>>, vector<1x32xf32>
    %c0_1 = arith.constant 0 : index
    %c0_2 = arith.constant 0 : index
    %1 = vector.load %arg1[%c0_1, %c0_2] : memref<256x32xf32, #tpu.memory_space<vmem>>, vector<256x32xf32>
    %cst = arith.constant dense<0.000000e+00> : vector<1x256xf32>
    %2 = tpu.matmul %0, %1, %cst {dimension_numbers = #tpu.dot_dimension_numbers<[1], [1], [0], [0], [0, 0, 1, 0], [], []>} : vector<1x32xf32>, vector<256x32xf32>, vector<1x256xf32> -> vector<1x256xf32>
    %c0_3 = arith.constant 0 : index
    %c0_4 = arith.constant 0 : index
    %3 = vector.load %arg3[%c0_3, %c0_4] : memref<1x256xf32, #tpu.memory_space<vmem>>, vector<1x256xf32>
    %4 = arith.addf %2, %3 : vector<1x256xf32>
    %c0_5 = arith.constant 0 : index
    %c0_6 = arith.constant 0 : index
    %5 = vector.load %arg4[%c0_5, %c0_6] : memref<1x256xf32, #tpu.memory_space<vmem>>, vector<1x256xf32>
    tpu.vector_store %arg4[%c0_5, %c0_6], %4 {strides = array<i32>} : memref<1x256xf32, #tpu.memory_space<vmem>>, vector<1x256xf32>,
    return
  }
  func.func @transform_0(%arg0: i32) -> (i32, i32) {
    %c0_i32 = arith.constant 0 : i32
    %c0_i32_0 = arith.constant 0 : i32
    return %arg0, %c0_i32 : i32, i32
  }
  func.func @transform_1(%arg0: i32) -> (i32, i32) {
    %c0_i32 = arith.constant 0 : i32
    %c0_i32_0 = arith.constant 0 : i32
    %c0_i32_1 = arith.constant 0 : i32
    return %c0_i32, %c0_i32_0 : i32, i32
  }
  func.func @transform_2(%arg0: i32) -> (i32, i32) {
    %c0_i32 = arith.constant 0 : i32
    %c0_i32_0 = arith.constant 0 : i32
    return %c0_i32, %arg0 : i32, i32
  }
  func.func @transform_3(%arg0: i32) -> (i32, i32) {
    %c0_i32 = arith.constant 0 : i32
    %c0_i32_0 = arith.constant 0 : i32
    return %c0_i32, %arg0 : i32, i32
  }
}

</mosaic_0001>

<llo_original>
// kernel: tpu_custom_call.1
$region0: #{tpu_custom_call.1}
  #allocation0 [shape = 'u32[]', space=smem, size = 0x4, offset = 0x4, fixed_abs, tag = 'smem constant byte address 0x4 - core index']
  #allocation1 [shape = 'u32[144,128]{1,0:T(1,128)}', space=vmem, size = 0x12000, scoped, tag = 'internal scratch']
  %s0 = inlined_call_operand.vmem [shape: f32[768,32], index: 0, kind: input, shape index: {}]
  %s1 = inlined_call_operand.vmem [shape: f32[1,32], index: 1, kind: input, shape index: {}]
  %s2 = inlined_call_operand.vmem [shape: f32[1,768], index: 2, kind: input, shape index: {}]
  %s3 = inlined_call_operand.hbm [shape: f32[1,768], index: 3, kind: output, shape index: {}]
  %s4 = sld [smem:[#allocation0]]
  $region45: #{tpu_custom_call.1} parent=0
    _
  %s6 = ssub.s32 1, %s4
  %s7 = scalar_select 0, %s6, %s4
  $region1: #{tpu_custom_call.1} parent=0
    #allocation2 [shape = 'u8[2048]{0}', space=vmem, size = 0x800, scoped, tag = 'output window, operand 0']
    #allocation3 [shape = 's32[2]{0}', space=sflag, size = 0x8, scoped, tag = 'scoped memory for tpu_custom_call.1']
    %8 = vsyncpa [#allocation3], 0
    %s9 = scalar_lea.sflag [#allocation3], 1
    %10 = vsyncpa %s9, 0
    loop: start=0, step=1, limit=5
    $region2: #{tpu_custom_call.1} parent=1 // loop_pre_header
      _
    $region3: #{tpu_custom_call.1} parent=1 // loop_header
      %s12 = sphi 0, %s16
      %p13 = scmp.ge.s32.totalorder %s12, 5
      %s22 = sphi 0, %s24
      %s25 = sphi 0, %s22
      %s26 = sphi 0, %s25
      %s42 = sphi 0, %s26
      %s46 = sphi 0, %s46
      %s48 = sphi 0, %s46
      %s49 = sphi 0, %s48
      %s63 = sphi 0, %s49
      %s69 = sphi 0, %s71
      %s72 = sphi 0, %s69
      %s73 = sphi 0, %s72
      %s89 = sphi 0, %s73
      %s95 = sphi 0, %s97
      %s98 = sphi 0, %s95
      %s99 = sphi 0, %s98
      %s115 = sphi 0, %s99
    $region4: #{tpu_custom_call.1} parent=1 // loop_header_branch
      %15 = sbr.rel (%p13) target = $region8
    $region5: #{tpu_custom_call.1} parent=1 // loop_body
      %s17 = ssub.s32 %s12, 1
      %s18 = ssub.s32 %s12, 2
      %s19 = sadd.s32 %s12, 1
      %s20 = ssub.s32 %s12, %s19
      %p21 = scmp.eq.s32.totalorder %s20, 0
      %s23 = sadd.s32 %s22, 1
      %s24 = scalar_select %p21, %s22, %s23
      %p27 = pneg %p21
      %p28 = scmp.eq.s32.totalorder %s12, 2
      %p29 = por %p27, %p28
      %p30 = scmp.ne.s32.totalorder %s22, %s25
      %p31 = scmp.eq.s32.totalorder %s12, 0
      %p32 = por %p30, %p31
      %p33 = scmp.ne.s32.totalorder %s22, %s25
      %p34 = scmp.eq.s32.totalorder %s17, 2
      %p35 = por %p33, %p34
      %p36 = scmp.ne.s32.totalorder %s25, %s26
      %p37 = scmp.eq.s32.totalorder %s17, 0
      %p38 = por %p36, %p37
      %p39 = scmp.ne.s32.totalorder %s25, %s26
      %p40 = scmp.eq.s32.totalorder %s18, 2
      %p41 = por %p39, %p40
      %p43 = scmp.ne.s32.totalorder %s26, %s42
      %p44 = scmp.eq.s32.totalorder %s18, 0
      %p45 = por %p43, %p44
      %s47 = sadd.s32 %s46, 1
      %p50 = scmp.eq.s32.totalorder %s12, 2
      %p51 = scmp.ne.s32.totalorder %s46, %s48
      %p52 = scmp.eq.s32.totalorder %s12, 0
      %p53 = por %p51, %p52
      %p54 = scmp.ne.s32.totalorder %s46, %s48
      %p55 = scmp.eq.s32.totalorder %s17, 2
      %p56 = por %p54, %p55
      %p57 = scmp.ne.s32.totalorder %s48, %s49
      %p58 = scmp.eq.s32.totalorder %s17, 0
      %p59 = por %p57, %p58
      %p60 = scmp.ne.s32.totalorder %s48, %s49
      %p61 = scmp.eq.s32.totalorder %s18, 2
      %p62 = por %p60, %p61
      %p64 = scmp.ne.s32.totalorder %s49, %s63
      %p65 = scmp.eq.s32.totalorder %s18, 0
      %p66 = por %p64, %p65
      %s67 = ssub.s32 %s12, %s19
      %p68 = scmp.eq.s32.totalorder %s67, 0
      %s70 = sadd.s32 %s69, 1
      %s71 = scalar_select %p68, %s69, %s70
      %p74 = pneg %p68
      %p75 = scmp.eq.s32.totalorder %s12, 2
      %p76 = por %p74, %p75
      %p77 = scmp.ne.s32.totalorder %s69, %s72
      %p78 = scmp.eq.s32.totalorder %s12, 0
      %p79 = por %p77, %p78
      %p80 = scmp.ne.s32.totalorder %s69, %s72
      %p81 = scmp.eq.s32.totalorder %s17, 2
      %p82 = por %p80, %p81
      %p83 = scmp.ne.s32.totalorder %s72, %s73
      %p84 = scmp.eq.s32.totalorder %s17, 0
      %p85 = por %p83, %p84
      %p86 = scmp.ne.s32.totalorder %s72, %s73
      %p87 = scmp.eq.s32.totalorder %s18, 2
      %p88 = por %p86, %p87
      %p90 = scmp.ne.s32.totalorder %s73, %s89
      %p91 = scmp.eq.s32.totalorder %s18, 0
      %p92 = por %p90, %p91
      %s93 = ssub.s32 %s12, %s19
      %p94 = scmp.eq.s32.totalorder %s93, 0
      %s96 = sadd.s32 %s95, 1
      %s97 = scalar_select %p94, %s95, %s96
      %p100 = pneg %p94
      %p101 = scmp.eq.s32.totalorder %s12, 2
      %p102 = por %p100, %p101
      %p103 = scmp.ne.s32.totalorder %s95, %s98
      %p104 = scmp.eq.s32.totalorder %s12, 0
      %p105 = por %p103, %p104
      %p106 = scmp.ne.s32.totalorder %s95, %s98
      %p107 = scmp.eq.s32.totalorder %s17, 2
      %p108 = por %p106, %p107
      %p109 = scmp.ne.s32.totalorder %s98, %s99
      %p110 = scmp.eq.s32.totalorder %s17, 0
      %p111 = por %p109, %p110
      %p112 = scmp.ne.s32.totalorder %s98, %s99
      %p113 = scmp.eq.s32.totalorder %s18, 2
      %p114 = por %p112, %p113
      %p116 = scmp.ne.s32.totalorder %s99, %s115
      %p117 = scmp.eq.s32.totalorder %s18, 0
      %p118 = por %p116, %p117
      %p119 = scmp.le.s32.totalorder 1, %s12
      %p120 = scmp.lt.s32.totalorder %s12, 4
      %p121 = pnand %p119, %p120
      %p122 = pneg %p121
      // Predicated region
      $region9: #{tpu_custom_call.1} parent=5 // pred_check
        _
      $region10: #{tpu_custom_call.1} parent=5 // pred_check_branch
        %124 = sbr.rel (%p121) target = $region12
      $region11: #{tpu_custom_call.1} parent=5 // pred_region
        %s125 = ssub.s32 %s12, 1
        // Predicated region
        $region13: #{tpu_custom_call.1} parent=11 // pred_check
          %p126 = pneg %p59
        $region14: #{tpu_custom_call.1} parent=11 // pred_check_branch
          %128 = sbr.rel (%p126) target = $region16
        $region15: #{tpu_custom_call.1} parent=11 // pred_region
          _
        $region16: #{tpu_custom_call.1} parent=11 // pred_fallthru
          _
      $region12: #{tpu_custom_call.1} parent=5 // pred_fallthru
        _
      %p129 = scmp.lt.s32.totalorder %s12, 3
      // Predicated region
      $region17: #{tpu_custom_call.1} parent=5 // pred_check
        %p130 = pneg %p129
      $region18: #{tpu_custom_call.1} parent=5 // pred_check_branch
        %132 = sbr.rel (%p130) target = $region20
      $region19: #{tpu_custom_call.1} parent=5 // pred_region
        // Predicated region
        $region21: #{tpu_custom_call.1} parent=19 // pred_check
          %p133 = pneg %p32
        $region22: #{tpu_custom_call.1} parent=19 // pred_check_branch
          %135 = sbr.rel (%p133) target = $region24
        $region23: #{tpu_custom_call.1} parent=19 // pred_region
          %s136 = smul.u32 32, %s12
          %p137 = scmp.lt.s32.totalorder %s136, 95
          %s138 = scalar_select %p137, %s136, 95
          %s139 = smul.addr %s138, 8
          %s140 = scalar_lea.vmem %s0, %s139
          %s141 = smul.u32 32, %s12
        $region24: #{tpu_custom_call.1} parent=19 // pred_fallthru
          _
        // Predicated region
        $region25: #{tpu_custom_call.1} parent=19 // pred_check
          %p142 = pneg %p79
        $region26: #{tpu_custom_call.1} parent=19 // pred_check_branch
          %144 = sbr.rel (%p142) target = $region28
        $region27: #{tpu_custom_call.1} parent=19 // pred_region
          %s145 = smul.u32 2, %s12
          %p146 = scmp.lt.s32.totalorder %s145, 5
          %s147 = scalar_select %p146, %s145, 5
          %s148 = scalar_lea.vmem %s2, %s147
          %s149 = smul.u32 2, %s12
        $region28: #{tpu_custom_call.1} parent=19 // pred_fallthru
          _
      $region20: #{tpu_custom_call.1} parent=5 // pred_fallthru
        _
      %p150 = scmp.le.s32.totalorder 1, %s12
      %p151 = scmp.lt.s32.totalorder %s12, 4
      %p152 = pnand %p150, %p151
      %p153 = pneg %p152
      // Predicated region
      $region29: #{tpu_custom_call.1} parent=5 // pred_check
        _
      $region30: #{tpu_custom_call.1} parent=5 // pred_check_branch
        %155 = sbr.rel (%p152) target = $region32
      $region31: #{tpu_custom_call.1} parent=5 // pred_region
        %s156 = ssub.s32 %s12, 1
        %s157 = smul.u32 32, %s17
        %p158 = scmp.lt.s32.totalorder %s157, 95
        %s159 = scalar_select %p158, %s157, 95
        %s160 = smul.addr %s159, 8
        %s161 = scalar_lea.vmem %s0, %s160
        %p162 = pneg %p38
        %p163 = pneg %p35
        %p164 = pneg %p59
        %p165 = pneg %p56
        %s166 = smul.u32 2, %s17
        %p167 = scmp.lt.s32.totalorder %s166, 5
        %s168 = scalar_select %p167, %s166, 5
        %s169 = scalar_lea.vmem %s2, %s168
        %p170 = pneg %p85
        %p171 = pneg %p82
        %p172 = pneg %p111
        %p173 = pneg %p108
        %s174 = sand.u32 %s98, 1
        %s175 = scalar_lea.sflag [#allocation3], %s174
        %s176 = sand.u32 %s98, 1
        %s177 = smul.addr %s176, 2
        %s178 = scalar_lea.vmem [#allocation2], %s177
        %s179 = smul.u32 32, %s17
        %p180 = scmp.lt.s32.totalorder %s179, 95
        %s181 = scalar_select %p180, %s179, 95
        %s182 = smul.addr %s181, 8
        %s183 = scalar_lea.vmem %s0, %s182
        %s184 = smul.u32 32, %s17
        %s185 = smul.u32 2, %s17
        %p186 = scmp.lt.s32.totalorder %s185, 5
        %s187 = scalar_select %p186, %s185, 5
        %s188 = scalar_lea.vmem %s2, %s187
        %s189 = smul.u32 2, %s17
        %s190 = smul.u32 2, %s17
        %v191 = vld [vmem:[%s1] sm:$0x1]
        %v192 = vld [vmem:[%s183] sm:$0xff]
        %v193 = vld [vmem:[%s183 + $0x8] sm:$0xff]
        %v194 = vld [vmem:[%s183 + $0x10] sm:$0xff]
        %v195 = vld [vmem:[%s183 + $0x18] sm:$0xff]
        %v196 = vld [vmem:[%s183 + $0x20] sm:$0xff]
        %v197 = vld [vmem:[%s183 + $0x28] sm:$0xff]
        %v198 = vld [vmem:[%s183 + $0x30] sm:$0xff]
        %v199 = vld [vmem:[%s183 + $0x38] sm:$0xff]
        %v200 = vld [vmem:[%s183 + $0x40] sm:$0xff]
        %v201 = vld [vmem:[%s183 + $0x48] sm:$0xff]
        %v202 = vld [vmem:[%s183 + $0x50] sm:$0xff]
        %v203 = vld [vmem:[%s183 + $0x58] sm:$0xff]
        %v204 = vld [vmem:[%s183 + $0x60] sm:$0xff]
        %v205 = vld [vmem:[%s183 + $0x68] sm:$0xff]
        %v206 = vld [vmem:[%s183 + $0x70] sm:$0xff]
        %v207 = vld [vmem:[%s183 + $0x78] sm:$0xff]
        %v208 = vld [vmem:[%s183 + $0x80] sm:$0xff]
        %v209 = vld [vmem:[%s183 + $0x88] sm:$0xff]
        %v210 = vld [vmem:[%s183 + $0x90] sm:$0xff]
        %v211 = vld [vmem:[%s183 + $0x98] sm:$0xff]
        %v212 = vld [vmem:[%s183 + $0xa0] sm:$0xff]
        %v213 = vld [vmem:[%s183 + $0xa8] sm:$0xff]
        %v214 = vld [vmem:[%s183 + $0xb0] sm:$0xff]
        %v215 = vld [vmem:[%s183 + $0xb8] sm:$0xff]
        %v216 = vld [vmem:[%s183 + $0xc0] sm:$0xff]
        %v217 = vld [vmem:[%s183 + $0xc8] sm:$0xff]
        %v218 = vld [vmem:[%s183 + $0xd0] sm:$0xff]
        %v219 = vld [vmem:[%s183 + $0xd8] sm:$0xff]
        %v220 = vld [vmem:[%s183 + $0xe0] sm:$0xff]
        %v221 = vld [vmem:[%s183 + $0xe8] sm:$0xff]
        %v222 = vld [vmem:[%s183 + $0xf0] sm:$0xff]
        %v223 = vld [vmem:[%s183 + $0xf8] sm:$0xff]
        %v224 = vld [vmem:[%s188] sm:$0x3]
        %v226 = vlaneseq
        %v227 = vshrl.u32 %v226, 7
        %v228 = vsub.s32 0, %v227
        %v229 = vrot.slane %v224, %v228
        %v230 = vlaneseq
        %v231 = vshrl.u32 %v230, 7
        %v232 = vsub.s32 1, %v231
        %v233 = vrot.slane %v224, %v232
        %vm236 = vcmask 261120
        %v238 = vsel %vm236, %v191, 0
        %v241 = vsel %vm236, %v192, 0
        %v244 = vsel %vm236, %v193, 0
        %v247 = vsel %vm236, %v194, 0
        %v250 = vsel %vm236, %v195, 0
        %v253 = vsel %vm236, %v196, 0
        %v256 = vsel %vm236, %v197, 0
        %v259 = vsel %vm236, %v198, 0
        %v262 = vsel %vm236, %v199, 0
        %v265 = vsel %vm236, %v200, 0
        %v268 = vsel %vm236, %v201, 0
        %v271 = vsel %vm236, %v202, 0
        %v274 = vsel %vm236, %v203, 0
        %v277 = vsel %vm236, %v204, 0
        %v280 = vsel %vm236, %v205, 0
        %v283 = vsel %vm236, %v206, 0
        %v286 = vsel %vm236, %v207, 0
        %v289 = vsel %vm236, %v208, 0
        %v292 = vsel %vm236, %v209, 0
        %v295 = vsel %vm236, %v210, 0
        %v298 = vsel %vm236, %v211, 0
        %v301 = vsel %vm236, %v212, 0
        %v304 = vsel %vm236, %v213, 0
        %v307 = vsel %vm236, %v214, 0
        %v310 = vsel %vm236, %v215, 0
        %v313 = vsel %vm236, %v216, 0
        %v316 = vsel %vm236, %v217, 0
        %v319 = vsel %vm236, %v218, 0
        %v322 = vsel %vm236, %v219, 0
        %v325 = vsel %vm236, %v220, 0
        %v328 = vsel %vm236, %v221, 0
        %v331 = vsel %vm236, %v222, 0
        %v334 = vsel %vm236, %v223, 0
        %336 = vmatprep.subr.mxu0 0.0
        %337 = vmatpush1.xpose.msra.mxu0 %v241
        %338 = vmatprep.subr.mxu0 0.0
        %339 = vmatpush1.xpose.msra.mxu0 %v244
        %340 = vmatprep.subr.mxu0 0.0
        %341 = vmatpush1.xpose.msra.mxu0 %v247
        %342 = vmatprep.subr.mxu0 0.0
        %343 = vmatpush1.xpose.msra.mxu0 %v250
        %344 = vmatprep.subr.mxu0 0.0
        %345 = vmatpush1.xpose.msra.mxu0 %v253
        %346 = vmatprep.subr.mxu0 0.0
        %347 = vmatpush1.xpose.msra.mxu0 %v256
        %348 = vmatprep.subr.mxu0 0.0
        %349 = vmatpush1.xpose.msra.mxu0 %v259
        %350 = vmatprep.subr.mxu0 0.0
        %351 = vmatpush1.xpose.msra.mxu0 %v262
        %352 = vmatprep.subr.mxu0 0.0
        %353 = vmatpush1.xpose.msra.mxu0 %v265
        %354 = vmatprep.subr.mxu0 0.0
        %355 = vmatpush1.xpose.msra.mxu0 %v268
        %356 = vmatprep.subr.mxu0 0.0
        %357 = vmatpush1.xpose.msra.mxu0 %v271
        %358 = vmatprep.subr.mxu0 0.0
        %359 = vmatpush1.xpose.msra.mxu0 %v274
        %360 = vmatprep.subr.mxu0 0.0
        %361 = vmatpush1.xpose.msra.mxu0 %v277
        %362 = vmatprep.subr.mxu0 0.0
        %363 = vmatpush1.xpose.msra.mxu0 %v280
        %364 = vmatprep.subr.mxu0 0.0
        %365 = vmatpush1.xpose.msra.mxu0 %v283
        %366 = vmatprep.subr.mxu0 0.0
        %367 = vmatpush1.xpose.msra.mxu0 %v286
        %368 = vmatprep.subr.mxu0 0.0
        %369 = vmatpush1.xpose.msra.mxu0 %v289
        %370 = vmatprep.subr.mxu0 0.0
        %371 = vmatpush1.xpose.msra.mxu0 %v292
        %372 = vmatprep.subr.mxu0 0.0
        %373 = vmatpush1.xpose.msra.mxu0 %v295
        %374 = vmatprep.subr.mxu0 0.0
        %375 = vmatpush1.xpose.msra.mxu0 %v298
        %376 = vmatprep.subr.mxu0 0.0
        %377 = vmatpush1.xpose.msra.mxu0 %v301
        %378 = vmatprep.subr.mxu0 0.0
        %379 = vmatpush1.xpose.msra.mxu0 %v304
        %380 = vmatprep.subr.mxu0 0.0
        %381 = vmatpush1.xpose.msra.mxu0 %v307
        %382 = vmatprep.subr.mxu0 0.0
        %383 = vmatpush1.xpose.msra.mxu0 %v310
        %384 = vmatprep.subr.mxu0 0.0
        %385 = vmatpush1.xpose.msra.mxu0 %v313
        %386 = vmatprep.subr.mxu0 0.0
        %387 = vmatpush1.xpose.msra.mxu0 %v316
        %388 = vmatprep.subr.mxu0 0.0
        %389 = vmatpush1.xpose.msra.mxu0 %v319
        %390 = vmatprep.subr.mxu0 0.0
        %391 = vmatpush1.xpose.msra.mxu0 %v322
        %392 = vmatprep.subr.mxu0 0.0
        %393 = vmatpush1.xpose.msra.mxu0 %v325
        %394 = vmatprep.subr.mxu0 0.0
        %395 = vmatpush1.xpose.msra.mxu0 %v328
        %396 = vmatprep.subr.mxu0 0.0
        %397 = vmatpush1.xpose.msra.mxu0 %v331
        %398 = vmatprep.subr.mxu0 0.0
        %399 = vmatpush1.xpose.msra.mxu0 %v334
        %400 = vmatprep.mubr.f32.mxu0 0.0
        %401 = vmatmul.mubr.f32.gmra.mrb[0].mxu0 %v238
        %v402 = vpop.f32.mrb[0].mxu0
        %v403 = vadd.f32 %v229, %v402
        %v404 = vpop.f32.mrb[0].mxu0
        %v405 = vadd.f32 %v233, %v404
        %406 = vdwg.mxu0
        %v409 = vcombine.low %v403, %v405
        %v411 = vunpack.c.l.s4 1966171168
        %v412 = vunpack.c.0.s8 %v411
        %v413 = vlaneseq
        %v414 = vshrl.u32 %v413, 7
        %v415 = vsub.s32 %v412, %v414
        %v416 = vrot.slane %v409, %v415
        %v418 = vunpack.c.l.s4 1966171168
        %v419 = vunpack.c.0.s8 %v418
        %v420 = vlaneseq
        %v421 = vshrl.u32 %v420, 7
        %v422 = vsub.s32 %v419, %v421
        %v423 = vrot.slane %v416, %v422
        %v425 = vlaneseq
        %vm426 = vcmp.ge.s32.totalorder %v425, 0
        %vm427 = vcmp.lt.s32.totalorder %v425, 256
        %vm428 = vmand %vm426, %vm427
        %429 = vst.msk [vmem:[%s178] sm:$0x3] %vm428, %v423
        %s430 = sand.u32 %s98, 1
        %s431 = scalar_lea.sflag [#allocation3], %s430
        %s432 = sand.u32 %s98, 1
        %s433 = smul.addr %s432, 2
        %s434 = scalar_lea.vmem [#allocation2], %s433
        // Predicated region
        $region33: #{tpu_custom_call.1} parent=31 // pred_check
          %p435 = pneg %p108
        $region34: #{tpu_custom_call.1} parent=31 // pred_check_branch
          %437 = sbr.rel (%p435) target = $region36
        $region35: #{tpu_custom_call.1} parent=31 // pred_region
          %s438 = smul.u32 2, %s17
          %s440 = ssub.s32 32, 32
          %441 = vsyncadd %s431, %s440
          %s442 = smul.addr %s438, 16
          %s443 = scalar_lea.hbm %s3, %s442
          %s445 = sshll.u32 %s434, 4
          %s446 = int_to_ptr.vmem [resolvable:$true] %s445
          %448 = dma.vmem_to_hbm [thread:$0]  %s446, 32, %s443, %s431
        $region36: #{tpu_custom_call.1} parent=31 // pred_fallthru
          _
      $region32: #{tpu_custom_call.1} parent=5 // pred_fallthru
        _
      %p449 = scmp.le.s32.totalorder 2, %s12
      // Predicated region
      $region37: #{tpu_custom_call.1} parent=5 // pred_check
        %p450 = pneg %p449
      $region38: #{tpu_custom_call.1} parent=5 // pred_check_branch
        %452 = sbr.rel (%p450) target = $region40
      $region39: #{tpu_custom_call.1} parent=5 // pred_region
        %s453 = ssub.s32 %s12, 2
        // Predicated region
        $region41: #{tpu_custom_call.1} parent=39 // pred_check
          %p454 = pneg %p114
        $region42: #{tpu_custom_call.1} parent=39 // pred_check_branch
          %456 = sbr.rel (%p454) target = $region44
        $region43: #{tpu_custom_call.1} parent=39 // pred_region
          %s457 = sand.u32 %s99, 1
          %s458 = scalar_lea.sflag [#allocation3], %s457
          %s459 = sand.u32 %s99, 1
          %s460 = smul.addr %s459, 2
          %s461 = scalar_lea.vmem [#allocation2], %s460
          %462 = dma.done %s458, 32
        $region44: #{tpu_custom_call.1} parent=39 // pred_fallthru
          _
      $region40: #{tpu_custom_call.1} parent=5 // pred_fallthru
        _
    $region6: #{tpu_custom_call.1} parent=1 // loop_footer
      %s16 = sadd.s32 1, %s12
    $region7: #{tpu_custom_call.1} parent=1 // loop_footer_branch
      %11 = sbr.rel target = $region3
    $region8: #{tpu_custom_call.1} parent=1 // loop_exit
      _
    %463 = vsyncpa [#allocation3], 1
    %s464 = scalar_lea.sflag [#allocation3], 1
    %465 = vsyncpa %s464, 1

</llo_original>
